<compile_context>
chip_gen: v7x
topology: tpu7x:2x2x1
jax: 0.10.0
libtpu: 0.0.40
codegen_flags: <defaults>
</compile_context>

<pallas_src>
import functools

import jax
import jax.numpy as jnp
from jax import lax
from jax.experimental import pallas as pl
from jax.experimental.pallas import tpu as pltpu


# ----------------------------- tiling helpers -----------------------------

def _pick_tile(dim, preferred):
    """Largest tile <= preferred that divides dim (full dim if it already fits)."""
    if dim <= preferred:
        return dim
    t = preferred
    while t > 1 and dim % t != 0:
        t //= 2
    return t if dim % t == 0 else dim


_VMEM_LIMIT = 48 * 1024 * 1024  # safe on v5e/v6e (128 MiB) and v7x (64 MiB)


# ----------------------------- tiled matmul -----------------------------

def _matmul_kernel(x_ref, w_ref, o_ref, acc_ref):
    k = pl.program_id(2)

    @pl.when(k == 0)
    def _():
        acc_ref[...] = jnp.zeros_like(acc_ref)

    acc_ref[...] += jnp.dot(x_ref[...], w_ref[...],
                            preferred_element_type=jnp.float32)

    @pl.when(k == pl.num_programs(2) - 1)
    def _():
        o_ref[...] = acc_ref[...].astype(o_ref.dtype)


def _matmul_res_kernel(x_ref, w_ref, res_ref, o_ref, acc_ref):
    k = pl.program_id(2)

    @pl.when(k == 0)
    def _():
        acc_ref[...] = jnp.zeros_like(acc_ref)

    acc_ref[...] += jnp.dot(x_ref[...], w_ref[...],
                            preferred_element_type=jnp.float32)

    @pl.when(k == pl.num_programs(2) - 1)
    def _():
        o_ref[...] = (acc_ref[...] + res_ref[...].astype(jnp.float32)
                      ).astype(o_ref.dtype)


def linear(x2d, w, out_dtype, residual=None, *, tm=256, tn=512, tk=512):
    """y = x2d @ w (+ residual); tiled, double-buffered, f32 accumulation."""
    M, K = x2d.shape
    K2, N = w.shape
    assert K == K2
    tm = _pick_tile(M, tm)
    tn = _pick_tile(N, tn)
    tk = _pick_tile(K, tk)
    grid = (M // tm, N // tn, K // tk)

    in_specs = [
        pl.BlockSpec((tm, tk), lambda i, j, k: (i, k)),
        pl.BlockSpec((tk, tn), lambda i, j, k: (k, j)),
    ]
    args = (x2d, w)
    kernel = _matmul_kernel
    if residual is not None:
        in_specs = in_specs + [pl.BlockSpec((tm, tn), lambda i, j, k: (i, j))]
        args = (x2d, w, residual)
        kernel = _matmul_res_kernel

    return pl.pallas_call(
        kernel,
        out_shape=jax.ShapeDtypeStruct((M, N), out_dtype),
        grid=grid,
        in_specs=in_specs,
        out_specs=pl.BlockSpec((tm, tn), lambda i, j, k: (i, j)),
        scratch_shapes=[pltpu.VMEM((tm, tn), jnp.float32)],
        compiler_params=pltpu.CompilerParams(
            dimension_semantics=("parallel", "parallel", "arbitrary"),
            vmem_limit_bytes=_VMEM_LIMIT,
        ),
    )(*args)


# ----------------------------- RMSNorm -----------------------------

def _rmsnorm_kernel(x_ref, w_ref, o_ref, *, eps):
    x = x_ref[...].astype(jnp.float32)
    ms = jnp.mean(x * x, axis=-1, keepdims=True)
    inv = lax.rsqrt(ms + eps)
    o_ref[...] = ((x * inv) * w_ref[...].astype(jnp.float32)).astype(o_ref.dtype)


def rmsnorm(x2d, w, out_dtype, eps=1e-5, *, tm=256):
    """RMSNorm over last dim; fp32 math, emits `out_dtype` (bf16) directly."""
    M, E = x2d.shape
    tm = _pick_tile(M, tm)
    w2d = w.reshape(1, E)
    return pl.pallas_call(
        functools.partial(_rmsnorm_kernel, eps=eps),
        out_shape=jax.ShapeDtypeStruct((M, E), out_dtype),
        grid=(M // tm,),
        in_specs=[
            pl.BlockSpec((tm, E), lambda i: (i, 0)),
            pl.BlockSpec((1, E), lambda i: (0, 0)),
        ],
        out_specs=pl.BlockSpec((tm, E), lambda i: (i, 0)),
        compiler_params=pltpu.CompilerParams(
            dimension_semantics=("parallel",),
        ),
    )(x2d, w2d)


# ----------------------------- RoPE (Pallas) -----------------------------

def _rope_kernel(x_ref, cos_ref, sin_ref, o_ref, *, scale):
    x = x_ref[...].astype(jnp.float32)          # (tt, Dh)
    cos = cos_ref[...].astype(jnp.float32)      # (tt, Dh)
    sin = sin_ref[...].astype(jnp.float32)      # (tt, Dh)
    d = x.shape[-1]
    x1 = x[:, : d // 2]
    x2 = x[:, d // 2:]
    rotated = jnp.concatenate([-x2, x1], axis=-1)
    o_ref[...] = ((x * cos + rotated * sin) * scale).astype(o_ref.dtype)


def rope_apply(x, cos, sin, *, scale=1.0, tt=256):
    """Apply RoPE (and an optional fused scalar scale) to x: (B, Hn, T, Dh)."""
    B, Hn, T, Dh = x.shape
    assert Dh % 2 == 0
    tt = _pick_tile(T, tt)
    cos_t = cos[:T]
    sin_t = sin[:T]
    x_spec = pl.BlockSpec((None, None, tt, Dh), lambda b, h, i: (b, h, i, 0))
    cs_spec = pl.BlockSpec((tt, Dh), lambda b, h, i: (i, 0))
    return pl.pallas_call(
        functools.partial(_rope_kernel, scale=scale),
        out_shape=jax.ShapeDtypeStruct(x.shape, x.dtype),
        grid=(B, Hn, T // tt),
        in_specs=[x_spec, cs_spec, cs_spec],
        out_specs=x_spec,
        compiler_params=pltpu.CompilerParams(
            dimension_semantics=("parallel", "parallel", "parallel"),
            vmem_limit_bytes=_VMEM_LIMIT,
        ),
    )(x, cos_t, sin_t)


# ----------------------------- flash GQA attention -----------------------------

def _flash_attn_kernel(q_ref, k_ref, v_ref, o_ref, m_sc, l_sc, acc_sc,
                       *, tq, tkv):
    qi = pl.program_id(2)
    ki = pl.program_id(3)

    @pl.when(ki == 0)
    def _():
        m_sc[...] = jnp.full_like(m_sc, -jnp.inf)
        l_sc[...] = jnp.zeros_like(l_sc)
        acc_sc[...] = jnp.zeros_like(acc_sc)

    # Causal skip: KV tile entirely in the future of this Q tile -> no compute.
    @pl.when(ki * tkv <= qi * tq + (tq - 1))
    def _():
        q = q_ref[...]                 # (tq, Dh) bf16, already 1/sqrt(Dh)-scaled
        k = k_ref[...]                 # (tkv, Dh) bf16
        v = v_ref[...]                 # (tkv, Dh) bf16
        # bf16 operands into the MXU, f32 accumulation.
        s = lax.dot_general(q, k, (((1,), (1,)), ((), ())),
                            preferred_element_type=jnp.float32)   # (tq, tkv)
        row = qi * tq + lax.broadcasted_iota(jnp.int32, (tq, tkv), 0)
        col = ki * tkv + lax.broadcasted_iota(jnp.int32, (tq, tkv), 1)
        s = jnp.where(col > row, -1e30, s)                        # causal mask
        m_prev = m_sc[...]
        m_new = jnp.maximum(m_prev, s.max(axis=-1, keepdims=True))
        alpha = jnp.exp(m_prev - m_new)
        p = jnp.exp(s - m_new)
        l_sc[...] = alpha * l_sc[...] + p.sum(axis=-1, keepdims=True)
        acc_sc[...] = alpha * acc_sc[...] + jnp.dot(
            p.astype(v.dtype), v, preferred_element_type=jnp.float32)
        m_sc[...] = m_new

    @pl.when(ki == pl.num_programs(3) - 1)
    def _():
        o_ref[...] = (acc_sc[...] * pl.reciprocal(l_sc[...], approx=True)
                      ).astype(o_ref.dtype)


def gqa_attention(q, k, v, out_dtype, *, tq=256, tkv=512):
    """q: (B, H, T, Dh) pre-scaled; k, v: (B, G, T, Dh) un-repeated (GQA).

    Heads are mapped onto their KV group inside the index_map, so K/V are never
    materialized H/G times in HBM.
    """
    B, H, T, Dh = q.shape
    G = k.shape[1]
    group_size = H // G
    tq = _pick_tile(T, tq)
    tkv = _pick_tile(T, tkv)
    grid = (B, H, T // tq, T // tkv)

    q_spec = pl.BlockSpec((None, None, tq, Dh), lambda b, h, i, j: (b, h, i, 0))
    kv_spec = pl.BlockSpec((None, None, tkv, Dh),
                           lambda b, h, i, j: (b, h // group_size, j, 0))
    o_spec = pl.BlockSpec((None, None, tq, Dh), lambda b, h, i, j: (b, h, i, 0))

    return pl.pallas_call(
        functools.partial(_flash_attn_kernel, tq=tq, tkv=tkv),
        out_shape=jax.ShapeDtypeStruct((B, H, T, Dh), out_dtype),
        grid=grid,
        in_specs=[q_spec, kv_spec, kv_spec],
        out_specs=o_spec,
        scratch_shapes=[
            pltpu.VMEM((tq, 1), jnp.float32),   # running max
            pltpu.VMEM((tq, 1), jnp.float32),   # running denom
            pltpu.VMEM((tq, Dh), jnp.float32),  # running output accumulator
        ],
        compiler_params=pltpu.CompilerParams(
            dimension_semantics=("parallel", "parallel", "parallel", "arbitrary"),
            vmem_limit_bytes=_VMEM_LIMIT,
        ),
    )(q, k, v)


# ----------------------------- fused SwiGLU FFN -----------------------------

def _ffn_kernel(x_ref, w1_ref, w2_ref, w3_ref, res_ref, o_ref, acc_ref):
    hi = pl.program_id(1)

    @pl.when(hi == 0)
    def _():
        acc_ref[...] = jnp.zeros_like(acc_ref)

    x = x_ref[...]                                   # (tm, E) bf16
    h1 = jnp.dot(x, w1_ref[...], preferred_element_type=jnp.float32)
    h2 = jnp.dot(x, w2_ref[...], preferred_element_type=jnp.float32)
    h = (h1 * jax.nn.sigmoid(h1)) * h2               # silu(fc1) * fc2, f32
    acc_ref[...] += jnp.dot(h.astype(w3_ref.dtype), w3_ref[...],
                            preferred_element_type=jnp.float32)

    @pl.when(hi == pl.num_programs(1) - 1)
    def _():
        o_ref[...] = (acc_ref[...] + res_ref[...].astype(jnp.float32)
                      ).astype(o_ref.dtype)


def feed_forward(x2d, w1, w2, w3, residual, out_dtype, *, tm=256, th=512):
    """SwiGLU FFN with the hidden dim tiled as a reduction axis + fused residual."""
    M, E = x2d.shape
    Hd = w1.shape[1]
    tm = _pick_tile(M, tm)
    th = _pick_tile(Hd, th)
    grid = (M // tm, Hd // th)
    return pl.pallas_call(
        _ffn_kernel,
        out_shape=jax.ShapeDtypeStruct((M, E), out_dtype),
        grid=grid,
        in_specs=[
            pl.BlockSpec((tm, E), lambda i, h: (i, 0)),
            pl.BlockSpec((E, th), lambda i, h: (0, h)),
            pl.BlockSpec((E, th), lambda i, h: (0, h)),
            pl.BlockSpec((th, E), lambda i, h: (h, 0)),
            pl.BlockSpec((tm, E), lambda i, h: (i, 0)),
        ],
        out_specs=pl.BlockSpec((tm, E), lambda i, h: (i, 0)),
        scratch_shapes=[pltpu.VMEM((tm, E), jnp.float32)],
        compiler_params=pltpu.CompilerParams(
            dimension_semantics=("parallel", "arbitrary"),
            vmem_limit_bytes=_VMEM_LIMIT,
        ),
    )(x2d, w1, w2, w3, residual)


# ----------------------------- RoPE table precompute (host/XLA, one-time) ----

def precompute_rope_params(head_dim, theta_base=10000.0, context_length=4096,
                           freq_config=None):
    assert head_dim % 2 == 0, "Embedding dimension must be even"
    inv_freq = 1.0 / theta_base ** (
        jnp.arange(0, head_dim, 2)[: head_dim // 2].astype(jnp.float32) / head_dim
    )
    if freq_config is not None:
        low_freq_wavelen = (
            freq_config["original_context_length"] / freq_config["low_freq_factor"]
        )
        high_freq_wavelen = (
            freq_config["original_context_length"] / freq_config["high_freq_factor"]
        )
        wavelen = 2 * jnp.pi / inv_freq
        inv_freq_llama = jnp.where(
            wavelen > low_freq_wavelen, inv_freq / freq_config["factor"], inv_freq
        )
        smooth_factor = (
            freq_config["original_context_length"] / wavelen
            - freq_config["low_freq_factor"]
        ) / (freq_config["high_freq_factor"] - freq_config["low_freq_factor"])
        smoothed_inv_freq = (
            (1 - smooth_factor) * (inv_freq / freq_config["factor"])
            + smooth_factor * inv_freq
        )
        is_medium_freq = (wavelen <= low_freq_wavelen) & (wavelen >= high_freq_wavelen)
        inv_freq = jnp.where(is_medium_freq, smoothed_inv_freq, inv_freq_llama)
    positions = jnp.arange(context_length).astype(jnp.float32)
    angles = positions[:, None] * inv_freq[None, :]
    angles = jnp.concatenate([angles, angles], axis=1)
    return jnp.cos(angles), jnp.sin(angles)


# ----------------------------- Model forward -----------------------------

def transformer_block(x, p, cos, sin, cfg):
    B, T, E = x.shape
    H = cfg["n_heads"]
    G = cfg["n_kv_groups"]
    Dh = E // H
    dtype = cfg["dtype"]
    x2d = x.reshape(B * T, E)

    # --- attention sub-block ---
    xn = rmsnorm(x2d, p["norm1_w"], jnp.bfloat16)
    qkv = linear(xn, p["wqkv"], dtype)                        # fused Q/K/V matmul
    q = qkv[:, : H * Dh].reshape(B, T, H, Dh).transpose(0, 2, 1, 3)
    k = qkv[:, H * Dh: (H + G) * Dh].reshape(B, T, G, Dh).transpose(0, 2, 1, 3)
    v = qkv[:, (H + G) * Dh:].reshape(B, T, G, Dh).transpose(0, 2, 1, 3)
    # RoPE in Pallas; softmax 1/sqrt(Dh) scale folded into Q here (once).
    q = rope_apply(q, cos, sin, scale=1.0 / (Dh ** 0.5))
    k = rope_apply(k, cos, sin)
    ctx = gqa_attention(q, k, v, dtype)                       # (B, H, T, Dh)
    ctx2d = ctx.transpose(0, 2, 1, 3).reshape(B * T, E)
    x2d = linear(ctx2d, p["wo"], dtype, residual=x2d)         # out_proj + residual

    # --- feed-forward sub-block ---
    xn = rmsnorm(x2d, p["norm2_w"], jnp.bfloat16)
    x2d = feed_forward(xn, p["w1"], p["w2"], p["w3"], x2d, dtype)  # + residual
    return x2d.reshape(B, T, E)


def llama3_forward(in_idx, params, cos, sin, cfg):
    B, T = in_idx.shape
    E = cfg["emb_dim"]
    # TODO(synk): embedding gather stays in XLA (jnp.take); a DMA-gather Pallas
    # kernel would only pay off at very long sequence lengths.
    x = jnp.take(params["tok_emb"], in_idx, axis=0)           # (B, T, E) bf16
    for blk in params["blocks"]:
        x = transformer_block(x, blk, cos, sin, cfg)
    xn = rmsnorm(x.reshape(B * T, E), params["final_norm_w"], jnp.bfloat16)
    # lm head: vocab (N) tiled lane-dense; tn large multiple of 128 at real scale
    logits = linear(xn, params["out_head"], cfg["dtype"], tn=1024)
    return logits.reshape(B, T, cfg["vocab_size"])


# ----------------------------- Param init -----------------------------

def init_params(cfg, key):
    E = cfg["emb_dim"]
    H = cfg["n_heads"]
    G = cfg["n_kv_groups"]
    Dh = E // H
    Hd = cfg["hidden_dim"]
    V = cfg["vocab_size"]
    dtype = cfg["dtype"]

    keys = jax.random.split(key, 2 + cfg["n_layers"])

    def w(k, shape, scale=0.02):
        return (jax.random.normal(k, shape, jnp.float32) * scale).astype(dtype)

    params = {
        "tok_emb": w(keys[0], (V, E)),
        "out_head": w(keys[1], (E, V)),
        "final_norm_w": jnp.ones((E,), jnp.float32),
        "blocks": [],
    }
    for l in range(cfg["n_layers"]):
        ks = jax.random.split(keys[2 + l], 7)
        wq = w(ks[0], (E, H * Dh))
        wk = w(ks[1], (E, G * Dh))
        wv = w(ks[2], (E, G * Dh))
        params["blocks"].append({
            "wqkv": jnp.concatenate([wq, wk, wv], axis=1),    # fused QKV weight
            "wo": w(ks[3], (E, E)),
            "w1": w(ks[4], (E, Hd)),
            "w2": w(ks[5], (E, Hd)),
            "w3": w(ks[6], (Hd, E)),
            "norm1_w": jnp.ones((E,), jnp.float32),
            "norm2_w": jnp.ones((E,), jnp.float32),
        })
    return params


# ----------------------------- Main -----------------------------

if __name__ == "__main__":
    cfg = dict(
        vocab_size=128,
        context_length=64,
        emb_dim=64,
        hidden_dim=128,
        n_heads=4,
        n_kv_groups=2,
        n_layers=2,
        rope_base=10000.0,
        rope_freq=None,
        dtype=jnp.bfloat16,
    )

    key = jax.random.PRNGKey(0)
    pkey, ikey = jax.random.split(key)
    params = init_params(cfg, pkey)

    head_dim = cfg["emb_dim"] // cfg["n_heads"]
    cos, sin = precompute_rope_params(
        head_dim, cfg["rope_base"], cfg["context_length"], cfg["rope_freq"]
    )
    cos = cos.astype(cfg["dtype"])
    sin = sin.astype(cfg["dtype"])

    B, T = 2, 8
    in_idx = jax.random.randint(ikey, (B, T), 0, cfg["vocab_size"], dtype=jnp.int32)

    logits = llama3_forward(in_idx, params, cos, sin, cfg)
    jax.block_until_ready(logits)

    assert logits.shape == (B, T, cfg["vocab_size"]), logits.shape
    assert logits.dtype == cfg["dtype"], logits.dtype
    print("KERNEL_OK")
</pallas_src>

<mosaic_0001>
module attributes {stable_mosaic.version = 11 : i64} {
  func.func @_rmsnorm_kernel(%arg0: i32, %arg1: memref<16x64xbf16, #tpu.memory_space<vmem>>, %arg2: memref<1x64xf32, #tpu.memory_space<vmem>>, %arg3: memref<16x64xbf16, #tpu.memory_space<vmem>>) attributes {dimension_semantics = [#tpu.dimension_semantics<parallel>], iteration_bounds = array<i64: 1>, scalar_prefetch = 0 : i64, scratch_operands = 0 : i64, tpu.core_type = #tpu.core_type<tc>, window_params = [{transform_indices = @transform_0, window_bounds = array<i64: 16, 64>}, {pipeline_mode = #tpu.pipeline_mode<synchronous>, transform_indices = @transform_1, window_bounds = array<i64: 1, 64>}, {transform_indices = @transform_2, window_bounds = array<i64: 16, 64>}]} {
    %c0 = arith.constant 0 : index
    %c0_0 = arith.constant 0 : index
    %0 = vector.load %arg1[%c0, %c0_0] : memref<16x64xbf16, #tpu.memory_space<vmem>>, vector<16x64xbf16>
    %1 = arith.extf %0 : vector<16x64xbf16> to vector<16x64xf32>
    %2 = arith.mulf %1, %1 : vector<16x64xf32>
    %cst = arith.constant dense<0.000000e+00> : vector<16xf32>
    %3 = vector.multi_reduction <add>, %2, %cst [1] : vector<16x64xf32> to vector<16xf32>
    %4 = vector.shape_cast %3 : vector<16xf32> to vector<16x1xf32>
    %cst_1 = arith.constant 6.400000e+01 : f32
    %5 = vector.broadcast %cst_1 : f32 to vector<16x1xf32>
    %6 = arith.divf %4, %5 : vector<16x1xf32>
    %cst_2 = arith.constant 9.99999974E-6 : f32
    %7 = vector.broadcast %cst_2 : f32 to vector<16x1xf32>
    %8 = arith.addf %6, %7 : vector<16x1xf32>
    %9 = math.rsqrt %8 : vector<16x1xf32>
    %10 = vector.broadcast %9 : vector<16x1xf32> to vector<16x64xf32>
    %11 = arith.mulf %1, %10 : vector<16x64xf32>
    %c0_3 = arith.constant 0 : index
    %c0_4 = arith.constant 0 : index
    %12 = vector.load %arg2[%c0_3, %c0_4] : memref<1x64xf32, #tpu.memory_space<vmem>>, vector<1x64xf32>
    %13 = vector.broadcast %12 : vector<1x64xf32> to vector<16x64xf32>
    %14 = arith.mulf %11, %13 : vector<16x64xf32>
    %15 = arith.truncf %14 : vector<16x64xf32> to vector<16x64xbf16>
    %c0_5 = arith.constant 0 : index
    %c0_6 = arith.constant 0 : index
    %16 = vector.load %arg3[%c0_5, %c0_6] : memref<16x64xbf16, #tpu.memory_space<vmem>>, vector<16x64xbf16>
    tpu.vector_store %arg3[%c0_5, %c0_6], %15 {strides = array<i32>} : memref<16x64xbf16, #tpu.memory_space<vmem>>, vector<16x64xbf16>,
    return
  }
  func.func @transform_0(%arg0: i32) -> (i32, i32) {
    %c0_i32 = arith.constant 0 : i32
    %c0_i32_0 = arith.constant 0 : i32
    return %arg0, %c0_i32 : i32, i32
  }
  func.func @transform_1(%arg0: i32) -> (i32, i32) {
    %c0_i32 = arith.constant 0 : i32
    %c0_i32_0 = arith.constant 0 : i32
    %c0_i32_1 = arith.constant 0 : i32
    return %c0_i32, %c0_i32_0 : i32, i32
  }
  func.func @transform_2(%arg0: i32) -> (i32, i32) {
    %c0_i32 = arith.constant 0 : i32
    %c0_i32_0 = arith.constant 0 : i32
    return %arg0, %c0_i32 : i32, i32
  }
}

</mosaic_0001>

<llo_original>
// kernel: tpu_custom_call.1
$region0: #{tpu_custom_call.1}
  #allocation0 [shape = 'u32[]', space=smem, size = 0x4, offset = 0x4, fixed_abs, tag = 'smem constant byte address 0x4 - core index']
  #allocation1 [shape = 'u32[144,128]{1,0:T(1,128)}', space=vmem, size = 0x12000, scoped, tag = 'internal scratch']
  %s0 = inlined_call_operand.hbm [shape: bf16[16,64], index: 0, kind: input, shape index: {}]
  %s1 = inlined_call_operand.vmem [shape: f32[1,64], index: 1, kind: input, shape index: {}]
  %s2 = inlined_call_operand.hbm [shape: bf16[16,64], index: 2, kind: output, shape index: {}]
  %s3 = sld [smem:[#allocation0]]
  $region22: #{tpu_custom_call.1} parent=0
    _
  %s5 = ssub.s32 1, %s3
  %s6 = scalar_select 0, %s5, %s3
  $region1: #{tpu_custom_call.1} parent=0
    #allocation2 [shape = 'u8[4096]{0}', space=vmem, size = 0x1000, scoped, tag = 'input window, operand 0, single buffered']
    #allocation3 [shape = 's32[1]{0}', space=sflag, size = 0x4, scoped, tag = 'scoped memory for tpu_custom_call.1']
    #allocation4 [shape = 's32[1]{0}', space=sflag, size = 0x4, scoped, tag = 'scoped memory for tpu_custom_call.1']
    #allocation5 [shape = 'u8[4096]{0}', space=vmem, size = 0x1000, scoped, tag = 'output window, operand 0, single buffered']
    %7 = vsyncpa [#allocation3], 0
    %8 = vsyncpa [#allocation4], 0
    // Predicated region
    $region2: #{tpu_custom_call.1} parent=1 // pred_check
      _
    $region3: #{tpu_custom_call.1} parent=1 // pred_check_branch
      %10 = sbr.rel (0) target = $region5
    $region4: #{tpu_custom_call.1} parent=1 // pred_region
      %s12 = ssub.s32 128, 128
      %13 = vsyncadd [#allocation3], %s12
      %s14 = sshll.u32 [#allocation2], 4
      %s15 = int_to_ptr.vmem [resolvable:$true] %s14
      %20 = dma.hbm_to_vmem [thread:$0]  %s0, 128, %s15, [#allocation3], 64, 64, 4
    $region5: #{tpu_custom_call.1} parent=1 // pred_fallthru
      _
    // Predicated region
    $region6: #{tpu_custom_call.1} parent=1 // pred_check
      _
    $region7: #{tpu_custom_call.1} parent=1 // pred_check_branch
      %22 = sbr.rel (0) target = $region9
    $region8: #{tpu_custom_call.1} parent=1 // pred_region
      _
    $region9: #{tpu_custom_call.1} parent=1 // pred_fallthru
      _
    // Predicated region
    $region10: #{tpu_custom_call.1} parent=1 // pred_check
      _
    $region11: #{tpu_custom_call.1} parent=1 // pred_check_branch
      %24 = sbr.rel (0) target = $region13
    $region12: #{tpu_custom_call.1} parent=1 // pred_region
      %25 = dma.done [#allocation3], 128
    $region13: #{tpu_custom_call.1} parent=1 // pred_fallthru
      _
    %v26 = vld [vmem:[#allocation2] sm:$0xf]
    %v27 = vld [vmem:[#allocation2 + $0x4] sm:$0xf]
    %v28 = vunpack.c.l.bf16 %v26
    %v29 = vunpack.c.l.bf16 %v27
    %v30 = vmul.f32 %v28, %v28
    %v31 = vmul.f32 %v29, %v29
    %vm32 = vcmask 523264
    %v33 = vsel %vm32, %v30, 0.0
    %34 = vadd.xlane.f32.xlu0 %v33
    %v35 = vpop.xlane.xlu0 %34
    %v36 = vsel %vm32, %v31, 0.0
    %37 = vadd.xlane.f32.xlu0 %v36
    %v38 = vpop.xlane.xlu0 %37
    %v39 = vrcp.pop 64.0
    %v40 = vmul.f32 %v35, %v39
    %v41 = vmul.f32 %v38, %v39
    %v42 = vadd.f32 %v40, 1e-05
    %v43 = vadd.f32 %v41, 1e-05
    %v44 = vrsqrt.pop %v42
    %v45 = vrsqrt.pop %v43
    %v46 = vmul.f32 %v28, %v44
    %v47 = vmul.f32 %v29, %v45
    %v48 = vld [vmem:[%s1] sm:$0x1]
    %v50 = vlaneseq
    %v51 = vshrl.u32 %v50, 7
    %v52 = vsub.s32 0, %v51
    %v53 = vrot.slane %v48, %v52
    %v55 = vmul.f32 %v46, %v53
    %v56 = vmul.f32 %v47, %v53
    %v57 = vpack.c.bf16 %v56, %v55
    %v59 = vunpack.c.l.b16 %v57
    %v60 = vunpack.c.h.b16 %v57
    %v61 = vpack.c.b16 %v59, %v59
    %v62 = vpack.c.b16 %v60, %v60
    %vm65 = vcmask 519168
    %66 = vst.msk [vmem:[#allocation5] sm:$0xf] %vm65, %v61
    %67 = vst.msk [vmem:[#allocation5 + $0x4] sm:$0xf] %vm65, %v62
    // Predicated region
    $region14: #{tpu_custom_call.1} parent=1 // pred_check
      _
    $region15: #{tpu_custom_call.1} parent=1 // pred_check_branch
      %69 = sbr.rel (0) target = $region17
    $region16: #{tpu_custom_call.1} parent=1 // pred_region
      %s71 = ssub.s32 128, 128
      %72 = vsyncadd [#allocation4], %s71
      %s73 = sshll.u32 [#allocation5], 4
      %s74 = int_to_ptr.vmem [resolvable:$true] %s73
      %79 = dma.vmem_to_hbm [thread:$0]  %s74, 128, %s2, [#allocation4], 64, 64, 4
    $region17: #{tpu_custom_call.1} parent=1 // pred_fallthru
      _
    // Predicated region
    $region18: #{tpu_custom_call.1} parent=1 // pred_check
      _
    $region19: #{tpu_custom_call.1} parent=1 // pred_check_branch
      %81 = sbr.rel (0) target = $region21
    $region20: #{tpu_custom_call.1} parent=1 // pred_region
      %82 = dma.done [#allocation4], 128
    $region21: #{tpu_custom_call.1} parent=1 // pred_fallthru
      _
    %83 = vsyncpa [#allocation3], 1
    %84 = vsyncpa [#allocation4], 1

</llo_original>
